<compile_context>
chip_gen: v5e
topology: v5e:2x2
jax: 0.10.0
libtpu: 0.0.40
codegen_flags: <defaults>
</compile_context>

<pallas_src>
import functools

import jax
import jax.numpy as jnp
from jax.experimental import pallas as pl
from jax.experimental.pallas import tpu as pltpu


def _sap_kernel(x_ref, wt_ref, b_ref, attn_ref, o_ref, *, valid_t):
    # x_ref:    (Bt, Tp, D)  input frames for Bt batch rows (Tp % 8 == 0)
    # wt_ref:   (D, D)       pre-transposed Linear weight (W.T), in x dtype
    # b_ref:    (1, D)       Linear bias (f32)
    # attn_ref: (1, D)       attention vector (originally (D, 1)), f32
    # o_ref:    (Bt, D)      pooled output
    bt, t, d = x_ref.shape

    x3 = x_ref[...]                                    # (Bt, Tp, D)
    x2 = x3.reshape(bt * t, d)                         # layout no-op (Tp % 8 == 0)

    # Linear + tanh: one MXU matmul with M = Bt*Tp, K = N = D; inputs stay in
    # the input dtype (bf16 stays bf16 on the MXU), accumulation in f32.
    h2 = jnp.tanh(
        jnp.dot(x2, wt_ref[...], preferred_element_type=jnp.float32)
        + b_ref[...])                                  # (Bt*Tp, D) f32
    h3 = h2.reshape(bt, t, d)                          # (Bt, Tp, D)

    # Attention logits, lane-dense in T: (Bt,1,D) x (Bt,Tp,D) -> (Bt,1,Tp).
    # TODO(synk): audit this and the pooling einsum in the Mosaic dump for
    # per-batch M=1 vmatmul / vxpose chains; if they show up as a tail, switch
    # the logits to a VPU multiply + lane reduce and re-measure (second order:
    # the (Bt*T, D) linear matmul dominates on mem-bound shapes).
    attn_q = jnp.broadcast_to(attn_ref[...].reshape(1, 1, d), (bt, 1, d))
    logits = jnp.einsum("bqd,bkd->bqk", attn_q, h3,
                        preferred_element_type=jnp.float32)   # (Bt, 1, Tp)

    if valid_t < t:                                    # static: mask padded frames
        frame = jax.lax.broadcasted_iota(jnp.int32, (1, 1, t), 2)
        logits = jnp.where(frame < valid_t, logits, -jnp.inf)

    # Softmax over frames (lane axis), numerically stabilized.
    m = jnp.max(logits, axis=-1, keepdims=True)        # (Bt, 1, 1)
    e = jnp.exp(logits - m)                            # (Bt, 1, Tp)
    denom = jnp.sum(e, axis=-1, keepdims=True)         # (Bt, 1, 1)
    inv = pl.reciprocal(denom, approx=True)            # EUP slot, not a VPU divide
    inv = inv * (2.0 - denom * inv)                    # Newton step on a tiny tensor
    w = (e * inv).astype(x3.dtype)                     # keep pooling matmul in x dtype

    # Weighted pooling as a batched MXU matmul: (Bt,1,Tp) @ (Bt,Tp,D) -> (Bt,1,D).
    pooled = jnp.einsum("bqk,bkd->bqd", w, x3,
                        preferred_element_type=jnp.float32)
    o_ref[...] = pooled.reshape(bt, d).astype(o_ref.dtype)


def _vmem_budget():
    """Return (block-picking budget, vmem_limit cap) in bytes, per generation."""
    cap = None
    try:
        cap = getattr(pltpu.get_tpu_info(), "vmem_capacity_bytes", None)
    except Exception:
        cap = None
    if not cap or cap <= 0:
        cap = 64 * 1024 * 1024                  # unknown: assume v7x-class (smallest)
    if cap <= 64 * 1024 * 1024:                 # v7x: 64 MiB per TensorCore
        return 36 * 1024 * 1024, 40 * 1024 * 1024
    return 60 * 1024 * 1024, 64 * 1024 * 1024   # v5e / v6e: 128 MiB physical VMEM


def _pick_block_b(B, T, D, x_itemsize, budget_bytes):
    """Largest batch block whose pipelined VMEM working set fits the budget.
    No artificial Bt*T cap: the MXU takes large M as multiple passes; the only
    real limit is VMEM."""
    per_row = (2 * T * D * x_itemsize           # x window, double-buffered
               + T * D * 4                      # h = tanh(xW^T + b), f32 (tile-sized)
               + 2 * D * x_itemsize             # output window, double-buffered
               + 4 * (4 * T + 2 * D))           # logits / softmax / pooled row vectors
    resident = 2 * (D * D * x_itemsize + 2 * D * 4)   # W.T / bias / attention buffers
    avail = max(budget_bytes - resident, per_row)
    bb = max(1, avail // per_row)
    bb = min(bb, B)
    if B >= 16:
        bb = min(bb, B // 2)                    # >= 2 grid steps -> v7x megacore sharding
    if bb > 8:
        bb = (bb // 8) * 8                      # sublane-friendly batch blocks
    return max(1, int(bb))


def _build_sap_call(B, Tp, D, block_b, out_dtype, vmem_limit, valid_t,
                    single_buffer_consts):
    const_kwargs = ({"pipeline_mode": pl.Buffered(1)}
                    if single_buffer_consts else {})
    kernel = functools.partial(_sap_kernel, valid_t=valid_t)
    return pl.pallas_call(
        kernel,
        out_shape=jax.ShapeDtypeStruct((B, D), out_dtype),
        grid_spec=pltpu.PrefetchScalarGridSpec(
            num_scalar_prefetch=0,
            grid=(pl.cdiv(B, block_b),),        # ragged last block: rows independent,
            in_specs=[                          # OOB output rows dropped by masked store
                pl.BlockSpec((block_b, Tp, D), lambda b: (b, 0, 0)),      # x tile
                pl.BlockSpec((D, D), lambda b: (0, 0), **const_kwargs),   # W.T (resident)
                pl.BlockSpec((1, D), lambda b: (0, 0), **const_kwargs),   # bias
                pl.BlockSpec((1, D), lambda b: (0, 0), **const_kwargs),   # attention
            ],
            out_specs=pl.BlockSpec((block_b, D), lambda b: (b, 0)),
        ),
        compiler_params=pltpu.CompilerParams(
            dimension_semantics=("parallel",),
            vmem_limit_bytes=vmem_limit,
        ),
    )


def self_attentive_pooling(x, weight, bias, attention, *, block_b=None):
    """x: (B, T, D); weight: (D, D) nn.Linear weight (out, in); bias: (D,);
    attention: (D, 1). Returns (B, D), matching the PyTorch module."""
    x = jnp.asarray(x)
    B, T, D = x.shape
    x_dtype = x.dtype

    # One-time host-side layout / dtype prep (outside the per-batch grid loop).
    w_t = jnp.asarray(weight).T.astype(x_dtype)         # MXU runs in the input dtype
    bias2d = jnp.asarray(bias).reshape(1, D).astype(jnp.float32)
    attn2d = jnp.asarray(attention).reshape(1, D).astype(jnp.float32)

    # Pad frames to a sublane multiple so the in-kernel (Bt*T, D) reshape is a
    # layout no-op; padded frames get -inf logits inside the kernel.
    Tp = ((T + 7) // 8) * 8
    if Tp != T:
        x = jnp.pad(x, ((0, 0), (0, Tp - T), (0, 0)))

    # TODO(synk): when D is not a multiple of 128, the (B, D) output uses masked
    # vst.msk stores; making it lane-dense would require padding x's D too (extra
    # HBM traffic on a mem-bound kernel), so it is intentionally not done here.
    # TODO(synk): for very long T where a single (T, D) slab approaches the VMEM
    # budget, add an inner "arbitrary" grid axis over T with an online softmax.

    budget, limit_cap = _vmem_budget()
    isz = x_dtype.itemsize
    if block_b is None:
        block_b = _pick_block_b(B, Tp, D, isz, budget)
    block_b = max(1, min(int(block_b), B))

    # Explicit scoped-VMEM limit (v5e's default is only 16 MiB), with headroom,
    # clamped per generation (v7x only has 64 MiB per TensorCore).
    x_tile = block_b * Tp * D * isz
    h_tile = block_b * Tp * D * 4
    o_tile = block_b * D * isz
    consts = 2 * (D * D * isz + 2 * D * 4)
    need = (2 * x_tile + h_tile + 2 * o_tile + consts
            + block_b * 4 * (4 * Tp + 2 * D))
    vmem_limit = int(min(limit_cap, max(need * 3 // 2, 16 * 1024 * 1024)))

    args = (x, w_t, bias2d, attn2d)
    try:
        # Grid-invariant operands single-buffered (halves their resident VMEM).
        return _build_sap_call(B, Tp, D, block_b, x_dtype, vmem_limit, T,
                               single_buffer_consts=True)(*args)
    except Exception:
        # Fallback if this runtime rejects pl.Buffered(1) on pallas_call specs.
        return _build_sap_call(B, Tp, D, block_b, x_dtype, vmem_limit, T,
                               single_buffer_consts=False)(*args)


def _reference(x, weight, bias, attention):
    h = jnp.tanh(jnp.einsum("btd,ed->bte", x, weight) + bias)
    w = jnp.einsum("bte,eo->bto", h, attention)          # (B, T, 1)
    w = jax.nn.softmax(w, axis=1)
    return jnp.sum(x * w, axis=1)


if __name__ == "__main__":
    B, T, D = 2, 8, 32
    key = jax.random.PRNGKey(0)
    kx, kw, kb, ka = jax.random.split(key, 4)

    x = jax.random.normal(kx, (B, T, D), dtype=jnp.float32)
    # Deterministic parameter init (shapes from the module's __init__)
    weight = jax.random.normal(kw, (D, D), dtype=jnp.float32) * 0.1    # nn.Linear weight (out, in)
    bias = jax.random.normal(kb, (D,), dtype=jnp.float32) * 0.1        # nn.Linear bias
    attention = jax.random.normal(ka, (D, 1), dtype=jnp.float32) * 0.1

    out = self_attentive_pooling(x, weight, bias, attention)
    out = jax.block_until_ready(out)

    ref = _reference(x, weight, bias, attention)
    assert out.shape == (B, D)
    assert jnp.allclose(out, ref, atol=1e-4, rtol=1e-4), "mismatch vs reference"

    print("KERNEL_OK")
</pallas_src>

<mosaic_0001>
module attributes {stable_mosaic.version = 11 : i64} {
  func.func @_sap_kernel(%arg0: i32, %arg1: memref<2x8x32xf32, #tpu.memory_space<vmem>>, %arg2: memref<32x32xf32, #tpu.memory_space<vmem>>, %arg3: memref<1x32xf32, #tpu.memory_space<vmem>>, %arg4: memref<1x32xf32, #tpu.memory_space<vmem>>, %arg5: memref<2x32xf32, #tpu.memory_space<vmem>>) attributes {dimension_semantics = [#tpu.dimension_semantics<parallel>], iteration_bounds = array<i64: 1>, scalar_prefetch = 0 : i64, scratch_operands = 0 : i64, tpu.core_type = #tpu.core_type<tc>, window_params = [{transform_indices = @transform_0, window_bounds = array<i64: 2, 8, 32>}, {pipeline_mode = #tpu.pipeline_mode<synchronous>, transform_indices = @transform_1, window_bounds = array<i64: 32, 32>}, {pipeline_mode = #tpu.pipeline_mode<synchronous>, transform_indices = @transform_2, window_bounds = array<i64: 1, 32>}, {pipeline_mode = #tpu.pipeline_mode<synchronous>, transform_indices = @transform_3, window_bounds = array<i64: 1, 32>}, {transform_indices = @transform_4, window_bounds = array<i64: 2, 32>}]} {
    %c0 = arith.constant 0 : index
    %c0_0 = arith.constant 0 : index
    %c0_1 = arith.constant 0 : index
    %0 = vector.load %arg1[%c0, %c0_0, %c0_1] : memref<2x8x32xf32, #tpu.memory_space<vmem>>, vector<2x8x32xf32>
    %1 = vector.shape_cast %0 : vector<2x8x32xf32> to vector<16x32xf32>
    %c0_2 = arith.constant 0 : index
    %c0_3 = arith.constant 0 : index
    %2 = vector.load %arg2[%c0_2, %c0_3] : memref<32x32xf32, #tpu.memory_space<vmem>>, vector<32x32xf32>
    %cst = arith.constant dense<0.000000e+00> : vector<16x32xf32>
    %3 = tpu.matmul %1, %2, %cst {dimension_numbers = #tpu.dot_dimension_numbers<[1], [0], [0], [1], [0, 0, 1, 1], [], []>} : vector<16x32xf32>, vector<32x32xf32>, vector<16x32xf32> -> vector<16x32xf32>
    %c0_4 = arith.constant 0 : index
    %c0_5 = arith.constant 0 : index
    %4 = vector.load %arg3[%c0_4, %c0_5] : memref<1x32xf32, #tpu.memory_space<vmem>>, vector<1x32xf32>
    %5 = vector.broadcast %4 : vector<1x32xf32> to vector<16x32xf32>
    %6 = arith.addf %3, %5 : vector<16x32xf32>
    %7 = math.tanh %6 : vector<16x32xf32>
    %8 = vector.shape_cast %7 : vector<16x32xf32> to vector<2x8x32xf32>
    %c0_6 = arith.constant 0 : index
    %c0_7 = arith.constant 0 : index
    %9 = vector.load %arg4[%c0_6, %c0_7] : memref<1x32xf32, #tpu.memory_space<vmem>>, vector<1x32xf32>
    %10 = vector.shape_cast %9 : vector<1x32xf32> to vector<1x1x32xf32>
    %11 = vector.shape_cast %10 : vector<1x1x32xf32> to vector<1x1x32xf32>
    %12 = vector.broadcast %11 : vector<1x1x32xf32> to vector<2x1x32xf32>
    "tpu.trace_start"() <{level = 10 : i32, message = "bqd,bkd->bqk"}> : () -> ()
    %cst_8 = arith.constant dense<0.000000e+00> : vector<2x1x8xf32>
    %13 = tpu.matmul %12, %8, %cst_8 {dimension_numbers = #tpu.dot_dimension_numbers<[2], [2], [1], [1], [0, 0, 0, 1, 1, 1], [0], [0]>} : vector<2x1x32xf32>, vector<2x8x32xf32>, vector<2x1x8xf32> -> vector<2x1x8xf32>
    "tpu.trace_stop"() : () -> ()
    %cst_9 = arith.constant dense<0xFF800000> : vector<2x1xf32>
    %14 = vector.multi_reduction <maximumf>, %13, %cst_9 [2] : vector<2x1x8xf32> to vector<2x1xf32>
    %15 = vector.shape_cast %14 : vector<2x1xf32> to vector<2x1x1xf32>
    %16 = vector.broadcast %15 : vector<2x1x1xf32> to vector<2x1x8xf32>
    %17 = arith.subf %13, %16 : vector<2x1x8xf32>
    %18 = math.exp %17 : vector<2x1x8xf32>
    %cst_10 = arith.constant dense<0.000000e+00> : vector<2x1xf32>
    %19 = vector.multi_reduction <add>, %18, %cst_10 [2] : vector<2x1x8xf32> to vector<2x1xf32>
    %20 = vector.shape_cast %19 : vector<2x1xf32> to vector<2x1x1xf32>
    %21 = tpu.reciprocal %20 {approx = true} : vector<2x1x1xf32> -> vector<2x1x1xf32>
    %22 = arith.mulf %20, %21 : vector<2x1x1xf32>
    %cst_11 = arith.constant 2.000000e+00 : f32
    %23 = vector.broadcast %cst_11 : f32 to vector<2x1x1xf32>
    %24 = arith.subf %23, %22 : vector<2x1x1xf32>
    %25 = arith.mulf %21, %24 : vector<2x1x1xf32>
    %26 = vector.broadcast %25 : vector<2x1x1xf32> to vector<2x1x8xf32>
    %27 = arith.mulf %18, %26 : vector<2x1x8xf32>
    "tpu.trace_start"() <{level = 10 : i32, message = "bqk,bkd->bqd"}> : () -> ()
    %cst_12 = arith.constant dense<0.000000e+00> : vector<2x1x32xf32>
    %28 = tpu.matmul %27, %0, %cst_12 {dimension_numbers = #tpu.dot_dimension_numbers<[2], [1], [1], [2], [0, 0, 0, 1, 1, 2], [0], [0]>} : vector<2x1x8xf32>, vector<2x8x32xf32>, vector<2x1x32xf32> -> vector<2x1x32xf32>
    "tpu.trace_stop"() : () -> ()
    %29 = vector.shape_cast %28 : vector<2x1x32xf32> to vector<2x32xf32>
    %c0_13 = arith.constant 0 : index
    %c0_14 = arith.constant 0 : index
    %30 = vector.load %arg5[%c0_13, %c0_14] : memref<2x32xf32, #tpu.memory_space<vmem>>, vector<2x32xf32>
    tpu.vector_store %arg5[%c0_13, %c0_14], %29 {strides = array<i32>} : memref<2x32xf32, #tpu.memory_space<vmem>>, vector<2x32xf32>,
    return
  }
  func.func @transform_0(%arg0: i32) -> (i32, i32, i32) {
    %c0_i32 = arith.constant 0 : i32
    %c0_i32_0 = arith.constant 0 : i32
    %c0_i32_1 = arith.constant 0 : i32
    return %arg0, %c0_i32, %c0_i32_0 : i32, i32, i32
  }
  func.func @transform_1(%arg0: i32) -> (i32, i32) {
    %c0_i32 = arith.constant 0 : i32
    %c0_i32_0 = arith.constant 0 : i32
    %c0_i32_1 = arith.constant 0 : i32
    return %c0_i32, %c0_i32_0 : i32, i32
  }
  func.func @transform_2(%arg0: i32) -> (i32, i32) {
    %c0_i32 = arith.constant 0 : i32
    %c0_i32_0 = arith.constant 0 : i32
    %c0_i32_1 = arith.constant 0 : i32
    return %c0_i32, %c0_i32_0 : i32, i32
  }
  func.func @transform_3(%arg0: i32) -> (i32, i32) {
    %c0_i32 = arith.constant 0 : i32
    %c0_i32_0 = arith.constant 0 : i32
    %c0_i32_1 = arith.constant 0 : i32
    return %c0_i32, %c0_i32_0 : i32, i32
  }
  func.func @transform_4(%arg0: i32) -> (i32, i32) {
    %c0_i32 = arith.constant 0 : i32
    %c0_i32_0 = arith.constant 0 : i32
    return %arg0, %c0_i32 : i32, i32
  }
}

module attributes {stable_mosaic.version = 11 : i64} {
  func.func @_sap_kernel(%arg0: i32, %arg1: memref<2x8x32xf32, #tpu.memory_space<vmem>>, %arg2: memref<32x32xf32, #tpu.memory_space<vmem>>, %arg3: memref<1x32xf32, #tpu.memory_space<vmem>>, %arg4: memref<1x32xf32, #tpu.memory_space<vmem>>, %arg5: memref<2x32xf32, #tpu.memory_space<vmem>>) attributes {dimension_semantics = [#tpu.dimension_semantics<parallel>], iteration_bounds = array<i64: 1>, scalar_prefetch = 0 : i64, scratch_operands = 0 : i64, tpu.core_type = #tpu.core_type<tc>, window_params = [{transform_indices = @transform_0, window_bounds = array<i64: 2, 8, 32>}, {pipeline_mode = #tpu.pipeline_mode<synchronous>, transform_indices = @transform_1, window_bounds = array<i64: 32, 32>}, {pipeline_mode = #tpu.pipeline_mode<synchronous>, transform_indices = @transform_2, window_bounds = array<i64: 1, 32>}, {pipeline_mode = #tpu.pipeline_mode<synchronous>, transform_indices = @transform_3, window_bounds = array<i64: 1, 32>}, {transform_indices = @transform_4, window_bounds = array<i64: 2, 32>}]} {
    %c0 = arith.constant 0 : index
    %c0_0 = arith.constant 0 : index
    %c0_1 = arith.constant 0 : index
    %0 = vector.load %arg1[%c0, %c0_0, %c0_1] : memref<2x8x32xf32, #tpu.memory_space<vmem>>, vector<2x8x32xf32>
    %1 = vector.shape_cast %0 : vector<2x8x32xf32> to vector<16x32xf32>
    %c0_2 = arith.constant 0 : index
    %c0_3 = arith.constant 0 : index
    %2 = vector.load %arg2[%c0_2, %c0_3] : memref<32x32xf32, #tpu.memory_space<vmem>>, vector<32x32xf32>
    %cst = arith.constant dense<0.000000e+00> : vector<16x32xf32>
    %3 = tpu.matmul %1, %2, %cst {dimension_numbers = #tpu.dot_dimension_numbers<[1], [0], [0], [1], [0, 0, 1, 1], [], []>} : vector<16x32xf32>, vector<32x32xf32>, vector<16x32xf32> -> vector<16x32xf32>
    %c0_4 = arith.constant 0 : index
    %c0_5 = arith.constant 0 : index
    %4 = vector.load %arg3[%c0_4, %c0_5] : memref<1x32xf32, #tpu.memory_space<vmem>>, vector<1x32xf32>
    %5 = vector.broadcast %4 : vector<1x32xf32> to vector<16x32xf32>
    %6 = arith.addf %3, %5 : vector<16x32xf32>
    %7 = math.tanh %6 : vector<16x32xf32>
    %8 = vector.shape_cast %7 : vector<16x32xf32> to vector<2x8x32xf32>
    %c0_6 = arith.constant 0 : index
    %c0_7 = arith.constant 0 : index
    %9 = vector.load %arg4[%c0_6, %c0_7] : memref<1x32xf32, #tpu.memory_space<vmem>>, vector<1x32xf32>
    %10 = vector.shape_cast %9 : vector<1x32xf32> to vector<1x1x32xf32>
    %11 = vector.shape_cast %10 : vector<1x1x32xf32> to vector<1x1x32xf32>
    %12 = vector.broadcast %11 : vector<1x1x32xf32> to vector<2x1x32xf32>
    "tpu.trace_start"() <{level = 10 : i32, message = "bqd,bkd->bqk"}> : () -> ()
    %cst_8 = arith.constant dense<0.000000e+00> : vector<2x1x8xf32>
    %13 = tpu.matmul %12, %8, %cst_8 {dimension_numbers = #tpu.dot_dimension_numbers<[2], [2], [1], [1], [0, 0, 0, 1, 1, 1], [0], [0]>} : vector<2x1x32xf32>, vector<2x8x32xf32>, vector<2x1x8xf32> -> vector<2x1x8xf32>
    "tpu.trace_stop"() : () -> ()
    %cst_9 = arith.constant dense<0xFF800000> : vector<2x1xf32>
    %14 = vector.multi_reduction <maximumf>, %13, %cst_9 [2] : vector<2x1x8xf32> to vector<2x1xf32>
    %15 = vector.shape_cast %14 : vector<2x1xf32> to vector<2x1x1xf32>
    %16 = vector.broadcast %15 : vector<2x1x1xf32> to vector<2x1x8xf32>
    %17 = arith.subf %13, %16 : vector<2x1x8xf32>
    %18 = math.exp %17 : vector<2x1x8xf32>
    %cst_10 = arith.constant dense<0.000000e+00> : vector<2x1xf32>
    %19 = vector.multi_reduction <add>, %18, %cst_10 [2] : vector<2x1x8xf32> to vector<2x1xf32>
    %20 = vector.shape_cast %19 : vector<2x1xf32> to vector<2x1x1xf32>
    %21 = tpu.reciprocal %20 {approx = true} : vector<2x1x1xf32> -> vector<2x1x1xf32>
    %22 = arith.mulf %20, %21 : vector<2x1x1xf32>
    %cst_11 = arith.constant 2.000000e+00 : f32
    %23 = vector.broadcast %cst_11 : f32 to vector<2x1x1xf32>
    %24 = arith.subf %23, %22 : vector<2x1x1xf32>
    %25 = arith.mulf %21, %24 : vector<2x1x1xf32>
    %26 = vector.broadcast %25 : vector<2x1x1xf32> to vector<2x1x8xf32>
    %27 = arith.mulf %18, %26 : vector<2x1x8xf32>
    "tpu.trace_start"() <{level = 10 : i32, message = "bqk,bkd->bqd"}> : () -> ()
    %cst_12 = arith.constant dense<0.000000e+00> : vector<2x1x32xf32>
    %28 = tpu.matmul %27, %0, %cst_12 {dimension_numbers = #tpu.dot_dimension_numbers<[2], [1], [1], [2], [0, 0, 0, 1, 1, 2], [0], [0]>} : vector<2x1x8xf32>, vector<2x8x32xf32>, vector<2x1x32xf32> -> vector<2x1x32xf32>
    "tpu.trace_stop"() : () -> ()
    %29 = vector.shape_cast %28 : vector<2x1x32xf32> to vector<2x32xf32>
    %c0_13 = arith.constant 0 : index
    %c0_14 = arith.constant 0 : index
    %30 = vector.load %arg5[%c0_13, %c0_14] : memref<2x32xf32, #tpu.memory_space<vmem>>, vector<2x32xf32>
    tpu.vector_store %arg5[%c0_13, %c0_14], %29 {strides = array<i32>} : memref<2x32xf32, #tpu.memory_space<vmem>>, vector<2x32xf32>,
    return
  }
  func.func @transform_0(%arg0: i32) -> (i32, i32, i32) {
    %c0_i32 = arith.constant 0 : i32
    %c0_i32_0 = arith.constant 0 : i32
    %c0_i32_1 = arith.constant 0 : i32
    return %arg0, %c0_i32, %c0_i32_0 : i32, i32, i32
  }
  func.func @transform_1(%arg0: i32) -> (i32, i32) {
    %c0_i32 = arith.constant 0 : i32
    %c0_i32_0 = arith.constant 0 : i32
    %c0_i32_1 = arith.constant 0 : i32
    return %c0_i32, %c0_i32_0 : i32, i32
  }
  func.func @transform_2(%arg0: i32) -> (i32, i32) {
    %c0_i32 = arith.constant 0 : i32
    %c0_i32_0 = arith.constant 0 : i32
    %c0_i32_1 = arith.constant 0 : i32
    return %c0_i32, %c0_i32_0 : i32, i32
  }
  func.func @transform_3(%arg0: i32) -> (i32, i32) {
    %c0_i32 = arith.constant 0 : i32
    %c0_i32_0 = arith.constant 0 : i32
    %c0_i32_1 = arith.constant 0 : i32
    return %c0_i32, %c0_i32_0 : i32, i32
  }
  func.func @transform_4(%arg0: i32) -> (i32, i32) {
    %c0_i32 = arith.constant 0 : i32
    %c0_i32_0 = arith.constant 0 : i32
    return %arg0, %c0_i32 : i32, i32
  }
}

</mosaic_0001>

<llo_original>
// kernel: tpu_custom_call.1
$region0: #{tpu_custom_call.1}
  #allocation0 [shape = 'u32[]', space=smem, size = 0x4, offset = 0x4, fixed_abs, tag = 'smem constant byte address 0x4 - core index']
  #allocation1 [shape = 'u32[72,128]{1,0:T(1,128)}', space=vmem, size = 0x9000, scoped, tag = 'internal scratch']
  %s0 = inlined_call_operand.hbm [shape: f32[2,8,32], index: 0, kind: input, shape index: {}]
  %s1 = inlined_call_operand.hbm [shape: f32[32,32], index: 1, kind: input, shape index: {}]
  %s2 = inlined_call_operand.vmem [shape: f32[1,32], index: 2, kind: input, shape index: {}]
  %s3 = inlined_call_operand.vmem [shape: f32[1,32], index: 3, kind: input, shape index: {}]
  %s4 = inlined_call_operand.hbm [shape: f32[2,32], index: 4, kind: output, shape index: {}]
  %s5 = sld [smem:[#allocation0]]
  $region34: #{tpu_custom_call.1} parent=0
    _
  %s7 = ssub.s32 1, %s5
  %s8 = scalar_select 0, %s7, %s5
  $region1: #{tpu_custom_call.1} parent=0
    #allocation2 [shape = 'u8[8192]{0}', space=vmem, size = 0x2000, scoped, tag = 'input window, operand 0, single buffered']
    #allocation3 [shape = 's32[1]{0}', space=sflag, size = 0x4, scoped, tag = 'scoped memory for tpu_custom_call.1']
    #allocation4 [shape = 's32[1]{0}', space=sflag, size = 0x4, scoped, tag = 'scoped memory for tpu_custom_call.1']
    #allocation5 [shape = 'u8[16384]{0}', space=vmem, size = 0x4000, scoped, tag = 'input window, operand 1, single buffered']
    #allocation6 [shape = 's32[1]{0}', space=sflag, size = 0x4, scoped, tag = 'scoped memory for tpu_custom_call.1']
    #allocation7 [shape = 'u8[1024]{0}', space=vmem, size = 0x400, scoped, tag = 'output window, operand 0, single buffered']
    %9 = vsyncpa [#allocation3], 0
    %10 = vsyncpa [#allocation6], 0
    %11 = vsyncpa [#allocation4], 0
    // Predicated region
    $region2: #{tpu_custom_call.1} parent=1 // pred_check
      _
    $region3: #{tpu_custom_call.1} parent=1 // pred_check_branch
      %13 = sbr.rel (0) target = $region5
    $region4: #{tpu_custom_call.1} parent=1 // pred_region
      %15 = vsyncadd [#allocation3], 0
      %s16 = sshll.u32 %s0, 4
      %s17 = int_to_ptr.hbm [resolvable:$true] %s16
      %s18 = sshll.u32 [#allocation2], 4
      %s19 = int_to_ptr.vmem [resolvable:$true] %s18
      %24 = dma.hbm_to_vmem [thread:$0]  %s17, 256, %s19, [#allocation3], 128, 128, 8
    $region5: #{tpu_custom_call.1} parent=1 // pred_fallthru
      _
    // Predicated region
    $region6: #{tpu_custom_call.1} parent=1 // pred_check
      _
    $region7: #{tpu_custom_call.1} parent=1 // pred_check_branch
      %26 = sbr.rel (0) target = $region9
    $region8: #{tpu_custom_call.1} parent=1 // pred_region
      %28 = vsyncadd [#allocation6], 0
      %s29 = sshll.u32 %s1, 4
      %s30 = int_to_ptr.hbm [resolvable:$true] %s29
      %s31 = sshll.u32 [#allocation5], 4
      %s32 = int_to_ptr.vmem [resolvable:$true] %s31
      %37 = dma.hbm_to_vmem [thread:$0]  %s30, 512, %s32, [#allocation6], 128, 128, 8
    $region9: #{tpu_custom_call.1} parent=1 // pred_fallthru
      _
    // Predicated region
    $region10: #{tpu_custom_call.1} parent=1 // pred_check
      _
    $region11: #{tpu_custom_call.1} parent=1 // pred_check_branch
      %39 = sbr.rel (0) target = $region13
    $region12: #{tpu_custom_call.1} parent=1 // pred_region
      _
    $region13: #{tpu_custom_call.1} parent=1 // pred_fallthru
      _
    // Predicated region
    $region14: #{tpu_custom_call.1} parent=1 // pred_check
      _
    $region15: #{tpu_custom_call.1} parent=1 // pred_check_branch
      %41 = sbr.rel (0) target = $region17
    $region16: #{tpu_custom_call.1} parent=1 // pred_region
      _
    $region17: #{tpu_custom_call.1} parent=1 // pred_fallthru
      _
    // Predicated region
    $region18: #{tpu_custom_call.1} parent=1 // pred_check
      _
    $region19: #{tpu_custom_call.1} parent=1 // pred_check_branch
      %43 = sbr.rel (0) target = $region21
    $region20: #{tpu_custom_call.1} parent=1 // pred_region
      %45 = dma.done [#allocation3], 256
    $region21: #{tpu_custom_call.1} parent=1 // pred_fallthru
      _
    // Predicated region
    $region22: #{tpu_custom_call.1} parent=1 // pred_check
      _
    $region23: #{tpu_custom_call.1} parent=1 // pred_check_branch
      %47 = sbr.rel (0) target = $region25
    $region24: #{tpu_custom_call.1} parent=1 // pred_region
      %49 = dma.done [#allocation6], 512
    $region25: #{tpu_custom_call.1} parent=1 // pred_fallthru
      _
    %v50 = vld [vmem:[#allocation2] sm:$0xff]
    %v51 = vld [vmem:[#allocation2 + $0x8] sm:$0xff]
    %v52 = vld [vmem:[#allocation5] sm:$0xff]
    %v53 = vld [vmem:[#allocation5 + $0x8] sm:$0xff]
    %v54 = vld [vmem:[#allocation5 + $0x10] sm:$0xff]
    %v55 = vld [vmem:[#allocation5 + $0x18] sm:$0xff]
    %v56 = vld [vmem:[%s2] sm:$0x1]
    %v58 = vperm.slane %v56, 0
    %vm60 = vcmask 261120
    %v62 = vsel %vm60, %v50, 0
    %v65 = vsel %vm60, %v51, 0
    %67 = vmatpush.msra.mxu0 0.0
    %68 = vmatpush.msra.mxu0 0.0
    %69 = vmatpush.msra.mxu0 0.0
    %70 = vmatpush.msra.mxu0 0.0
    %71 = vmatpush.msra.mxu0 0.0
    %72 = vmatpush.msra.mxu0 0.0
    %73 = vmatpush.msra.mxu0 0.0
    %74 = vmatpush.msra.mxu0 0.0
    %75 = vmatpush.msra.mxu0 0.0
    %76 = vmatpush.msra.mxu0 0.0
    %77 = vmatpush.msra.mxu0 0.0
    %78 = vmatpush.msra.mxu0 0.0
    %79 = vmatpush.msra.mxu0 %v55
    %80 = vmatpush.msra.mxu0 %v54
    %81 = vmatpush.msra.mxu0 %v53
    %82 = vmatpush.msra.mxu0 %v52
    %83 = vmatmul.f32.gmra.mxu0 %v62
    %v84 = vpop.f32.mrf.mxu0
    %v85 = vadd.f32 %v58, %v84
    %86 = vmatmul.f32.gmra.mxu0 %v65
    %v87 = vpop.f32.mrf.mxu0
    %v88 = vadd.f32 %v58, %v87
    %89 = vdwg.mxu0
    %v90 = vtanh.pop %v85
    %v91 = vtanh.pop %v88
    %v92 = vld [vmem:[%s3] sm:$0x1]
    %v94 = vsel %vm60, %v92, 0
    %v97 = vsel %vm60, %v90, 0
    %99 = vmatpush.xpose.msra.mxu0 0.0
    %100 = vmatpush.xpose.msra.mxu0 0.0
    %101 = vmatpush.xpose.msra.mxu0 0.0
    %102 = vmatpush.xpose.msra.mxu0 0.0
    %103 = vmatpush.xpose.msra.mxu0 0.0
    %104 = vmatpush.xpose.msra.mxu0 0.0
    %105 = vmatpush.xpose.msra.mxu0 0.0
    %106 = vmatpush.xpose.msra.mxu0 0.0
    %107 = vmatpush.xpose.msra.mxu0 0.0
    %108 = vmatpush.xpose.msra.mxu0 0.0
    %109 = vmatpush.xpose.msra.mxu0 0.0
    %110 = vmatpush.xpose.msra.mxu0 0.0
    %111 = vmatpush.xpose.msra.mxu0 0.0
    %112 = vmatpush.xpose.msra.mxu0 0.0
    %113 = vmatpush.xpose.msra.mxu0 0.0
    %114 = vmatpush.xpose.msra.mxu0 %v97
    %115 = vmatmul.f32.gmra.mxu0 %v94
    %v116 = vpop.f32.mrf.mxu0
    %v117 = vadd.f32 0.0, %v116
    %118 = vdwg.mxu0
    %v120 = vsel %vm60, %v91, 0
    %122 = vmatpush.xpose.msra.mxu0 0.0
    %123 = vmatpush.xpose.msra.mxu0 0.0
    %124 = vmatpush.xpose.msra.mxu0 0.0
    %125 = vmatpush.xpose.msra.mxu0 0.0
    %126 = vmatpush.xpose.msra.mxu0 0.0
    %127 = vmatpush.xpose.msra.mxu0 0.0
    %128 = vmatpush.xpose.msra.mxu0 0.0
    %129 = vmatpush.xpose.msra.mxu0 0.0
    %130 = vmatpush.xpose.msra.mxu0 0.0
    %131 = vmatpush.xpose.msra.mxu0 0.0
    %132 = vmatpush.xpose.msra.mxu0 0.0
    %133 = vmatpush.xpose.msra.mxu0 0.0
    %134 = vmatpush.xpose.msra.mxu0 0.0
    %135 = vmatpush.xpose.msra.mxu0 0.0
    %136 = vmatpush.xpose.msra.mxu0 0.0
    %137 = vmatpush.xpose.msra.mxu0 %v120
    %138 = vmatmul.f32.gmra.mxu0 %v94
    %v139 = vpop.f32.mrf.mxu0
    %v140 = vadd.f32 0.0, %v139
    %141 = vdwg.mxu0
    %vm142 = vcmask 57344
    %v143 = vsel %vm142, %v117, -inf
    %144 = vmax.xlane.f32.xlu0 %v143
    %v145 = vpop.xlane.xlu0 %144
    %v146 = vsel %vm142, %v140, -inf
    %147 = vmax.xlane.f32.xlu0 %v146
    %v148 = vpop.xlane.xlu0 %147
    %v149 = vsub.f32 %v117, %v145
    %v150 = vsub.f32 %v140, %v148
    %v151 = vmul.f32 %v149, 1.442695
    %v152 = vpow.pop %v151
    %v153 = vmul.f32 %v150, 1.442695
    %v154 = vpow.pop %v153
    %v155 = vsel %vm142, %v152, 0.0
    %156 = vadd.xlane.f32.xlu0 %v155
    %v157 = vpop.xlane.xlu0 %156
    %v158 = vsel %vm142, %v154, 0.0
    %159 = vadd.xlane.f32.xlu0 %v158
    %v160 = vpop.xlane.xlu0 %159
    %v161 = vrcp.pop %v157
    %v162 = vrcp.pop %v160
    %v163 = vmul.f32 %v157, %v161
    %v164 = vmul.f32 %v160, %v162
    %v165 = vsub.f32 2.0, %v163
    %v166 = vsub.f32 2.0, %v164
    %v167 = vmul.f32 %v161, %v165
    %v168 = vmul.f32 %v162, %v166
    %v169 = vmul.f32 %v152, %v167
    %v170 = vmul.f32 %v154, %v168
    %vm171 = vcmask 64512
    %v173 = vsel %vm171, %v169, 0
    %175 = vmatpush.msra.mxu0 0.0
    %176 = vmatpush.msra.mxu0 0.0
    %177 = vmatpush.msra.mxu0 0.0
    %178 = vmatpush.msra.mxu0 0.0
    %179 = vmatpush.msra.mxu0 0.0
    %180 = vmatpush.msra.mxu0 0.0
    %181 = vmatpush.msra.mxu0 0.0
    %182 = vmatpush.msra.mxu0 0.0
    %183 = vmatpush.msra.mxu0 0.0
    %184 = vmatpush.msra.mxu0 0.0
    %185 = vmatpush.msra.mxu0 0.0
    %186 = vmatpush.msra.mxu0 0.0
    %187 = vmatpush.msra.mxu0 0.0
    %188 = vmatpush.msra.mxu0 0.0
    %189 = vmatpush.msra.mxu0 0.0
    %190 = vmatpush.msra.mxu0 %v50
    %191 = vmatmul.f32.gmra.mxu0 %v173
    %v192 = vpop.f32.mrf.mxu0
    %v193 = vadd.f32 0.0, %v192
    %194 = vdwg.mxu0
    %v196 = vsel %vm171, %v170, 0
    %198 = vmatpush.msra.mxu0 0.0
    %199 = vmatpush.msra.mxu0 0.0
    %200 = vmatpush.msra.mxu0 0.0
    %201 = vmatpush.msra.mxu0 0.0
    %202 = vmatpush.msra.mxu0 0.0
    %203 = vmatpush.msra.mxu0 0.0
    %204 = vmatpush.msra.mxu0 0.0
    %205 = vmatpush.msra.mxu0 0.0
    %206 = vmatpush.msra.mxu0 0.0
    %207 = vmatpush.msra.mxu0 0.0
    %208 = vmatpush.msra.mxu0 0.0
    %209 = vmatpush.msra.mxu0 0.0
    %210 = vmatpush.msra.mxu0 0.0
    %211 = vmatpush.msra.mxu0 0.0
    %212 = vmatpush.msra.mxu0 0.0
    %213 = vmatpush.msra.mxu0 %v51
    %214 = vmatmul.f32.gmra.mxu0 %v196
    %v215 = vpop.f32.mrf.mxu0
    %v216 = vadd.f32 0.0, %v215
    %217 = vdwg.mxu0
    %v220 = vrot.slane %v216, 7
    %vm221 = vcmask 1041409
    %v222 = vsel %vm221, %v220, %v193
    %vm224 = vcmask 254976
    %225 = vst.msk [vmem:[#allocation7] sm:$0x3] %vm224, %v222
    // Predicated region
    $region26: #{tpu_custom_call.1} parent=1 // pred_check
      _
    $region27: #{tpu_custom_call.1} parent=1 // pred_check_branch
      %227 = sbr.rel (0) target = $region29
    $region28: #{tpu_custom_call.1} parent=1 // pred_region
      %229 = vsyncadd [#allocation4], 0
      %s231 = sshll.u32 [#allocation7], 4
      %s232 = int_to_ptr.vmem [resolvable:$true] %s231
      %s233 = sshll.u32 %s4, 4
      %s234 = int_to_ptr.hbm [resolvable:$true] %s233
      %236 = dma.vmem_to_hbm [thread:$0]  %s232, 32, %s234, [#allocation4]
    $region29: #{tpu_custom_call.1} parent=1 // pred_fallthru
      _
    // Predicated region
    $region30: #{tpu_custom_call.1} parent=1 // pred_check
      _
    $region31: #{tpu_custom_call.1} parent=1 // pred_check_branch
      %238 = sbr.rel (0) target = $region33
    $region32: #{tpu_custom_call.1} parent=1 // pred_region
      %240 = dma.done [#allocation4], 32
    $region33: #{tpu_custom_call.1} parent=1 // pred_fallthru
      _
    %241 = vsyncpa [#allocation3], 1
    %242 = vsyncpa [#allocation6], 1
    %243 = vsyncpa [#allocation4], 1

// kernel: tpu_custom_call.1
$region0: #{tpu_custom_call.1}
  #allocation0 [shape = 'u32[]', space=smem, size = 0x4, offset = 0x4, fixed_abs, tag = 'smem constant byte address 0x4 - core index']
  #allocation1 [shape = 'u32[72,128]{1,0:T(1,128)}', space=vmem, size = 0x9000, scoped, tag = 'internal scratch']
  %s0 = inlined_call_operand.hbm [shape: f32[2,8,32], index: 0, kind: input, shape index: {}]
  %s1 = inlined_call_operand.hbm [shape: f32[32,32], index: 1, kind: input, shape index: {}]
  %s2 = inlined_call_operand.vmem [shape: f32[1,32], index: 2, kind: input, shape index: {}]
  %s3 = inlined_call_operand.vmem [shape: f32[1,32], index: 3, kind: input, shape index: {}]
  %s4 = inlined_call_operand.hbm [shape: f32[2,32], index: 4, kind: output, shape index: {}]
  %s5 = sld [smem:[#allocation0]]
  $region34: #{tpu_custom_call.1} parent=0
    _
  %s7 = ssub.s32 1, %s5
  %s8 = scalar_select 0, %s7, %s5
  $region1: #{tpu_custom_call.1} parent=0
    #allocation2 [shape = 'u8[8192]{0}', space=vmem, size = 0x2000, scoped, tag = 'input window, operand 0, single buffered']
    #allocation3 [shape = 's32[1]{0}', space=sflag, size = 0x4, scoped, tag = 'scoped memory for tpu_custom_call.1']
    #allocation4 [shape = 's32[1]{0}', space=sflag, size = 0x4, scoped, tag = 'scoped memory for tpu_custom_call.1']
    #allocation5 [shape = 'u8[16384]{0}', space=vmem, size = 0x4000, scoped, tag = 'input window, operand 1, single buffered']
    #allocation6 [shape = 's32[1]{0}', space=sflag, size = 0x4, scoped, tag = 'scoped memory for tpu_custom_call.1']
    #allocation7 [shape = 'u8[1024]{0}', space=vmem, size = 0x400, scoped, tag = 'output window, operand 0, single buffered']
    %9 = vsyncpa [#allocation3], 0
    %10 = vsyncpa [#allocation6], 0
    %11 = vsyncpa [#allocation4], 0
    // Predicated region
    $region2: #{tpu_custom_call.1} parent=1 // pred_check
      _
    $region3: #{tpu_custom_call.1} parent=1 // pred_check_branch
      %13 = sbr.rel (0) target = $region5
    $region4: #{tpu_custom_call.1} parent=1 // pred_region
      %15 = vsyncadd [#allocation3], 0
      %s16 = sshll.u32 %s0, 4
      %s17 = int_to_ptr.hbm [resolvable:$true] %s16
      %s18 = sshll.u32 [#allocation2], 4
      %s19 = int_to_ptr.vmem [resolvable:$true] %s18
      %24 = dma.hbm_to_vmem [thread:$0]  %s17, 256, %s19, [#allocation3], 128, 128, 8
    $region5: #{tpu_custom_call.1} parent=1 // pred_fallthru
      _
    // Predicated region
    $region6: #{tpu_custom_call.1} parent=1 // pred_check
      _
    $region7: #{tpu_custom_call.1} parent=1 // pred_check_branch
      %26 = sbr.rel (0) target = $region9
    $region8: #{tpu_custom_call.1} parent=1 // pred_region
      %28 = vsyncadd [#allocation6], 0
      %s29 = sshll.u32 %s1, 4
      %s30 = int_to_ptr.hbm [resolvable:$true] %s29
      %s31 = sshll.u32 [#allocation5], 4
      %s32 = int_to_ptr.vmem [resolvable:$true] %s31
      %37 = dma.hbm_to_vmem [thread:$0]  %s30, 512, %s32, [#allocation6], 128, 128, 8
    $region9: #{tpu_custom_call.1} parent=1 // pred_fallthru
      _
    // Predicated region
    $region10: #{tpu_custom_call.1} parent=1 // pred_check
      _
    $region11: #{tpu_custom_call.1} parent=1 // pred_check_branch
      %39 = sbr.rel (0) target = $region13
    $region12: #{tpu_custom_call.1} parent=1 // pred_region
      _
    $region13: #{tpu_custom_call.1} parent=1 // pred_fallthru
      _
    // Predicated region
    $region14: #{tpu_custom_call.1} parent=1 // pred_check
      _
    $region15: #{tpu_custom_call.1} parent=1 // pred_check_branch
      %41 = sbr.rel (0) target = $region17
    $region16: #{tpu_custom_call.1} parent=1 // pred_region
      _
    $region17: #{tpu_custom_call.1} parent=1 // pred_fallthru
      _
    // Predicated region
    $region18: #{tpu_custom_call.1} parent=1 // pred_check
      _
    $region19: #{tpu_custom_call.1} parent=1 // pred_check_branch
      %43 = sbr.rel (0) target = $region21
    $region20: #{tpu_custom_call.1} parent=1 // pred_region
      %45 = dma.done [#allocation3], 256
    $region21: #{tpu_custom_call.1} parent=1 // pred_fallthru
      _
    // Predicated region
    $region22: #{tpu_custom_call.1} parent=1 // pred_check
      _
    $region23: #{tpu_custom_call.1} parent=1 // pred_check_branch
      %47 = sbr.rel (0) target = $region25
    $region24: #{tpu_custom_call.1} parent=1 // pred_region
      %49 = dma.done [#allocation6], 512
    $region25: #{tpu_custom_call.1} parent=1 // pred_fallthru
      _
    %v50 = vld [vmem:[#allocation2] sm:$0xff]
    %v51 = vld [vmem:[#allocation2 + $0x8] sm:$0xff]
    %v52 = vld [vmem:[#allocation5] sm:$0xff]
    %v53 = vld [vmem:[#allocation5 + $0x8] sm:$0xff]
    %v54 = vld [vmem:[#allocation5 + $0x10] sm:$0xff]
    %v55 = vld [vmem:[#allocation5 + $0x18] sm:$0xff]
    %v56 = vld [vmem:[%s2] sm:$0x1]
    %v58 = vperm.slane %v56, 0
    %vm60 = vcmask 261120
    %v62 = vsel %vm60, %v50, 0
    %v65 = vsel %vm60, %v51, 0
    %67 = vmatpush.msra.mxu0 0.0
    %68 = vmatpush.msra.mxu0 0.0
    %69 = vmatpush.msra.mxu0 0.0
    %70 = vmatpush.msra.mxu0 0.0
    %71 = vmatpush.msra.mxu0 0.0
    %72 = vmatpush.msra.mxu0 0.0
    %73 = vmatpush.msra.mxu0 0.0
    %74 = vmatpush.msra.mxu0 0.0
    %75 = vmatpush.msra.mxu0 0.0
    %76 = vmatpush.msra.mxu0 0.0
    %77 = vmatpush.msra.mxu0 0.0
    %78 = vmatpush.msra.mxu0 0.0
    %79 = vmatpush.msra.mxu0 %v55
    %80 = vmatpush.msra.mxu0 %v54
    %81 = vmatpush.msra.mxu0 %v53
    %82 = vmatpush.msra.mxu0 %v52
    %83 = vmatmul.f32.gmra.mxu0 %v62
    %v84 = vpop.f32.mrf.mxu0
    %v85 = vadd.f32 %v58, %v84
    %86 = vmatmul.f32.gmra.mxu0 %v65
    %v87 = vpop.f32.mrf.mxu0
    %v88 = vadd.f32 %v58, %v87
    %89 = vdwg.mxu0
    %v90 = vtanh.pop %v85
    %v91 = vtanh.pop %v88
    %v92 = vld [vmem:[%s3] sm:$0x1]
    %v94 = vsel %vm60, %v92, 0
    %v97 = vsel %vm60, %v90, 0
    %99 = vmatpush.xpose.msra.mxu0 0.0
    %100 = vmatpush.xpose.msra.mxu0 0.0
    %101 = vmatpush.xpose.msra.mxu0 0.0
    %102 = vmatpush.xpose.msra.mxu0 0.0
    %103 = vmatpush.xpose.msra.mxu0 0.0
    %104 = vmatpush.xpose.msra.mxu0 0.0
    %105 = vmatpush.xpose.msra.mxu0 0.0
    %106 = vmatpush.xpose.msra.mxu0 0.0
    %107 = vmatpush.xpose.msra.mxu0 0.0
    %108 = vmatpush.xpose.msra.mxu0 0.0
    %109 = vmatpush.xpose.msra.mxu0 0.0
    %110 = vmatpush.xpose.msra.mxu0 0.0
    %111 = vmatpush.xpose.msra.mxu0 0.0
    %112 = vmatpush.xpose.msra.mxu0 0.0
    %113 = vmatpush.xpose.msra.mxu0 0.0
    %114 = vmatpush.xpose.msra.mxu0 %v97
    %115 = vmatmul.f32.gmra.mxu0 %v94
    %v116 = vpop.f32.mrf.mxu0
    %v117 = vadd.f32 0.0, %v116
    %118 = vdwg.mxu0
    %v120 = vsel %vm60, %v91, 0
    %122 = vmatpush.xpose.msra.mxu0 0.0
    %123 = vmatpush.xpose.msra.mxu0 0.0
    %124 = vmatpush.xpose.msra.mxu0 0.0
    %125 = vmatpush.xpose.msra.mxu0 0.0
    %126 = vmatpush.xpose.msra.mxu0 0.0
    %127 = vmatpush.xpose.msra.mxu0 0.0
    %128 = vmatpush.xpose.msra.mxu0 0.0
    %129 = vmatpush.xpose.msra.mxu0 0.0
    %130 = vmatpush.xpose.msra.mxu0 0.0
    %131 = vmatpush.xpose.msra.mxu0 0.0
    %132 = vmatpush.xpose.msra.mxu0 0.0
    %133 = vmatpush.xpose.msra.mxu0 0.0
    %134 = vmatpush.xpose.msra.mxu0 0.0
    %135 = vmatpush.xpose.msra.mxu0 0.0
    %136 = vmatpush.xpose.msra.mxu0 0.0
    %137 = vmatpush.xpose.msra.mxu0 %v120
    %138 = vmatmul.f32.gmra.mxu0 %v94
    %v139 = vpop.f32.mrf.mxu0
    %v140 = vadd.f32 0.0, %v139
    %141 = vdwg.mxu0
    %vm142 = vcmask 57344
    %v143 = vsel %vm142, %v117, -inf
    %144 = vmax.xlane.f32.xlu0 %v143
    %v145 = vpop.xlane.xlu0 %144
    %v146 = vsel %vm142, %v140, -inf
    %147 = vmax.xlane.f32.xlu0 %v146
    %v148 = vpop.xlane.xlu0 %147
    %v149 = vsub.f32 %v117, %v145
    %v150 = vsub.f32 %v140, %v148
    %v151 = vmul.f32 %v149, 1.442695
    %v152 = vpow.pop %v151
    %v153 = vmul.f32 %v150, 1.442695
    %v154 = vpow.pop %v153
    %v155 = vsel %vm142, %v152, 0.0
    %156 = vadd.xlane.f32.xlu0 %v155
    %v157 = vpop.xlane.xlu0 %156
    %v158 = vsel %vm142, %v154, 0.0
    %159 = vadd.xlane.f32.xlu0 %v158
    %v160 = vpop.xlane.xlu0 %159
    %v161 = vrcp.pop %v157
    %v162 = vrcp.pop %v160
    %v163 = vmul.f32 %v157, %v161
    %v164 = vmul.f32 %v160, %v162
    %v165 = vsub.f32 2.0, %v163
    %v166 = vsub.f32 2.0, %v164
    %v167 = vmul.f32 %v161, %v165
    %v168 = vmul.f32 %v162, %v166
    %v169 = vmul.f32 %v152, %v167
    %v170 = vmul.f32 %v154, %v168
    %vm171 = vcmask 64512
    %v173 = vsel %vm171, %v169, 0
    %175 = vmatpush.msra.mxu0 0.0
    %176 = vmatpush.msra.mxu0 0.0
    %177 = vmatpush.msra.mxu0 0.0
    %178 = vmatpush.msra.mxu0 0.0
    %179 = vmatpush.msra.mxu0 0.0
    %180 = vmatpush.msra.mxu0 0.0
    %181 = vmatpush.msra.mxu0 0.0
    %182 = vmatpush.msra.mxu0 0.0
    %183 = vmatpush.msra.mxu0 0.0
    %184 = vmatpush.msra.mxu0 0.0
    %185 = vmatpush.msra.mxu0 0.0
    %186 = vmatpush.msra.mxu0 0.0
    %187 = vmatpush.msra.mxu0 0.0
    %188 = vmatpush.msra.mxu0 0.0
    %189 = vmatpush.msra.mxu0 0.0
    %190 = vmatpush.msra.mxu0 %v50
    %191 = vmatmul.f32.gmra.mxu0 %v173
    %v192 = vpop.f32.mrf.mxu0
    %v193 = vadd.f32 0.0, %v192
    %194 = vdwg.mxu0
    %v196 = vsel %vm171, %v170, 0
    %198 = vmatpush.msra.mxu0 0.0
    %199 = vmatpush.msra.mxu0 0.0
    %200 = vmatpush.msra.mxu0 0.0
    %201 = vmatpush.msra.mxu0 0.0
    %202 = vmatpush.msra.mxu0 0.0
    %203 = vmatpush.msra.mxu0 0.0
    %204 = vmatpush.msra.mxu0 0.0
    %205 = vmatpush.msra.mxu0 0.0
    %206 = vmatpush.msra.mxu0 0.0
    %207 = vmatpush.msra.mxu0 0.0
    %208 = vmatpush.msra.mxu0 0.0
    %209 = vmatpush.msra.mxu0 0.0
    %210 = vmatpush.msra.mxu0 0.0
    %211 = vmatpush.msra.mxu0 0.0
    %212 = vmatpush.msra.mxu0 0.0
    %213 = vmatpush.msra.mxu0 %v51
    %214 = vmatmul.f32.gmra.mxu0 %v196
    %v215 = vpop.f32.mrf.mxu0
    %v216 = vadd.f32 0.0, %v215
    %217 = vdwg.mxu0
    %v220 = vrot.slane %v216, 7
    %vm221 = vcmask 1041409
    %v222 = vsel %vm221, %v220, %v193
    %vm224 = vcmask 254976
    %225 = vst.msk [vmem:[#allocation7] sm:$0x3] %vm224, %v222
    // Predicated region
    $region26: #{tpu_custom_call.1} parent=1 // pred_check
      _
    $region27: #{tpu_custom_call.1} parent=1 // pred_check_branch
      %227 = sbr.rel (0) target = $region29
    $region28: #{tpu_custom_call.1} parent=1 // pred_region
      %229 = vsyncadd [#allocation4], 0
      %s231 = sshll.u32 [#allocation7], 4
      %s232 = int_to_ptr.vmem [resolvable:$true] %s231
      %s233 = sshll.u32 %s4, 4
      %s234 = int_to_ptr.hbm [resolvable:$true] %s233
      %236 = dma.vmem_to_hbm [thread:$0]  %s232, 32, %s234, [#allocation4]
    $region29: #{tpu_custom_call.1} parent=1 // pred_fallthru
      _
    // Predicated region
    $region30: #{tpu_custom_call.1} parent=1 // pred_check
      _
    $region31: #{tpu_custom_call.1} parent=1 // pred_check_branch
      %238 = sbr.rel (0) target = $region33
    $region32: #{tpu_custom_call.1} parent=1 // pred_region
      %240 = dma.done [#allocation4], 32
    $region33: #{tpu_custom_call.1} parent=1 // pred_fallthru
      _
    %241 = vsyncpa [#allocation3], 1
    %242 = vsyncpa [#allocation6], 1
    %243 = vsyncpa [#allocation4], 1

</llo_original>
